<compile_context>
chip_gen: v7x
topology: tpu7x:2x2x1
jax: 0.10.0
libtpu: 0.0.40
codegen_flags: <defaults>
</compile_context>

<pallas_src>
import numpy as np

import jax
import jax.numpy as jnp
from jax.experimental import pallas as pl
from jax.experimental.pallas import tpu as pltpu


def _gather_copy_kernel(idx_ref, x_ref, o_ref):
    # idx_ref lives in SMEM (scalar prefetch); the actual gather happens in the
    # BlockSpec index_map, so the kernel body is a pure VMEM tile copy.
    del idx_ref
    o_ref[...] = x_ref[...]


def _slow_indices(T: int, alpha: int) -> np.ndarray:
    """torch.linspace(0, T-1, T//alpha).long() in float32, truncation toward 0."""
    n = T // alpha
    if n <= 0:
        return np.zeros((0,), dtype=np.int32)
    if n == 1:
        # torch.linspace(start, end, 1) == [start]
        return np.zeros((1,), dtype=np.int32)
    step = np.float32(T - 1) / np.float32(n - 1)
    vals = np.arange(n, dtype=np.float32) * step  # start == 0
    return vals.astype(np.int32)  # non-negative -> plain int cast == truncation


def slow_pathway_gather(frames: jax.Array, slow_idx: np.ndarray) -> jax.Array:
    """Gather `slow_idx` time steps along axis -3 of a (C, T, H, W) tensor."""
    C, T, H, W = frames.shape
    Ts = int(slow_idx.shape[0])

    if Ts == 0:
        # Degenerate T < alpha case: empty slow pathway, no kernel launch.
        return jnp.zeros((C, 0, H, W), dtype=frames.dtype)

    HW = H * W
    lane_dense = (HW % 128) == 0
    if lane_dense:
        # Free contiguous reshape -> last dim is an exact multiple of 128
        # (unmasked full-vreg loads/stores). Last two block dims equal the full
        # reshaped extents, so the (8,128) divisibility rule is satisfied.
        R = HW // 128
        x = frames.reshape(C, T, R, 128)
        blk = (C, 1, R, 128)
        out_shape = (C, Ts, R, 128)
    else:
        x = frames
        blk = (C, 1, H, W)
        out_shape = (C, Ts, H, W)

    idx = jnp.asarray(slow_idx, dtype=jnp.int32)

    out = pl.pallas_call(
        _gather_copy_kernel,
        out_shape=jax.ShapeDtypeStruct(out_shape, frames.dtype),
        grid_spec=pltpu.PrefetchScalarGridSpec(
            num_scalar_prefetch=1,
            grid=(Ts,),
            in_specs=[
                # Data-dependent temporal index: block (0, slow_idx[t], 0, 0),
                # covering all channels of the selected frame in one DMA.
                pl.BlockSpec(blk, lambda t, idx_ref: (0, idx_ref[t], 0, 0)),
            ],
            out_specs=pl.BlockSpec(blk, lambda t, idx_ref: (0, t, 0, 0)),
        ),
        compiler_params=pltpu.CompilerParams(
            # Ts axis is independent -> shard across both TCs on v7x.
            dimension_semantics=("parallel",),
        ),
    )(idx, x)

    return out.reshape(C, Ts, H, W)


def pack_pathway(frames: jax.Array, slow_fast_alpha: int):
    """JAX/Pallas equivalent of PackPathway.forward.

    Returns [slow_pathway, fast_pathway] just like the PyTorch module.
    """
    T = frames.shape[-3]
    slow_idx = _slow_indices(int(T), int(slow_fast_alpha))
    slow = slow_pathway_gather(frames, slow_idx)
    fast = frames  # identity pathway
    return [slow, fast]


if __name__ == "__main__":
    # Small, deterministic example consistent with the module's forward:
    # frames: (C=4, T=16, H=16, W=16), slow_fast_alpha=4 -> slow T=4.
    key = jax.random.PRNGKey(0)
    C, T, H, W = 4, 16, 16, 16
    alpha = 4
    frames = jax.random.normal(key, (C, T, H, W), dtype=jnp.float32)

    slow, fast = pack_pathway(frames, alpha)
    slow = jax.block_until_ready(slow)
    fast = jax.block_until_ready(fast)

    # Reference check (plain JAX gather) mirroring torch.index_select semantics.
    ref_idx = jnp.asarray(_slow_indices(T, alpha))
    ref_slow = jnp.take(frames, ref_idx, axis=-3)
    assert slow.shape == (C, T // alpha, H, W)
    assert fast.shape == frames.shape
    assert jnp.array_equal(slow, ref_slow)
    assert jnp.array_equal(fast, frames)

    print("KERNEL_OK")
</pallas_src>

<mosaic_0001>
module attributes {stable_mosaic.version = 11 : i64} {
  func.func @_gather_copy_kernel(%arg0: i32, %arg1: memref<4xi32, #tpu.memory_space<smem>>, %arg2: memref<4x1x2x128xf32, #tpu.memory_space<vmem>>, %arg3: memref<4x1x2x128xf32, #tpu.memory_space<vmem>>) attributes {dimension_semantics = [#tpu.dimension_semantics<parallel>], iteration_bounds = array<i64: 4>, scalar_prefetch = 1 : i64, scratch_operands = 0 : i64, tpu.core_type = #tpu.core_type<tc>, window_params = [{transform_indices = @transform_0, window_bounds = array<i64: 4, 1, 2, 128>}, {transform_indices = @transform_1, window_bounds = array<i64: 4, 1, 2, 128>}]} {
    %c0 = arith.constant 0 : index
    %c0_0 = arith.constant 0 : index
    %c0_1 = arith.constant 0 : index
    %c0_2 = arith.constant 0 : index
    %0 = vector.load %arg2[%c0, %c0_0, %c0_1, %c0_2] : memref<4x1x2x128xf32, #tpu.memory_space<vmem>>, vector<4x1x2x128xf32>
    %c0_3 = arith.constant 0 : index
    %c0_4 = arith.constant 0 : index
    %c0_5 = arith.constant 0 : index
    %c0_6 = arith.constant 0 : index
    %1 = vector.load %arg3[%c0_3, %c0_4, %c0_5, %c0_6] : memref<4x1x2x128xf32, #tpu.memory_space<vmem>>, vector<4x1x2x128xf32>
    tpu.vector_store %arg3[%c0_3, %c0_4, %c0_5, %c0_6], %0 {strides = array<i32>} : memref<4x1x2x128xf32, #tpu.memory_space<vmem>>, vector<4x1x2x128xf32>,
    return
  }
  func.func @transform_0(%arg0: i32, %arg1: memref<4xi32, #tpu.memory_space<smem>>) -> (i32, i32, i32, i32) {
    %0 = arith.index_cast %arg0 : i32 to index
    %1 = memref.load %arg1[%0] : memref<4xi32, #tpu.memory_space<smem>>
    %c0_i32 = arith.constant 0 : i32
    %c0_i32_0 = arith.constant 0 : i32
    %c0_i32_1 = arith.constant 0 : i32
    %c0_i32_2 = arith.constant 0 : i32
    return %c0_i32, %1, %c0_i32_0, %c0_i32_1 : i32, i32, i32, i32
  }
  func.func @transform_1(%arg0: i32, %arg1: memref<4xi32, #tpu.memory_space<smem>>) -> (i32, i32, i32, i32) {
    %c0_i32 = arith.constant 0 : i32
    %c0_i32_0 = arith.constant 0 : i32
    %c0_i32_1 = arith.constant 0 : i32
    %c0_i32_2 = arith.constant 0 : i32
    return %c0_i32, %arg0, %c0_i32_0, %c0_i32_1 : i32, i32, i32, i32
  }
}

</mosaic_0001>

<llo_original>
// kernel: tpu_custom_call.1
$region0: #{tpu_custom_call.1}
  #allocation0 [shape = 'u32[]', space=smem, size = 0x4, offset = 0x4, fixed_abs, tag = 'smem constant byte address 0x4 - core index']
  #allocation1 [shape = 'u32[144,128]{1,0:T(1,128)}', space=vmem, size = 0x12000, scoped, tag = 'internal scratch']
  #allocation2 [shape = 's32[1]{0}', space=sflag, size = 0x4, scoped, tag = 'scoped memory for tpu_custom_call.1']
  #allocation3 [shape = 'u8[512]{0}', space=smem, size = 0x200, scoped, tag = 'prefetched SMEM operand 0']
  %s0 = inlined_call_operand.hbm [shape: s32[4], index: 0, kind: input, shape index: {}]
  %s1 = inlined_call_operand.hbm [shape: f32[4,16,2,128], index: 1, kind: input, shape index: {}]
  %s2 = inlined_call_operand.hbm [shape: f32[4,4,2,128], index: 2, kind: output, shape index: {}]
  %s3 = sld [smem:[#allocation0]]
  $region41: #{tpu_custom_call.1} parent=0
    _
  %s5 = ssub.s32 1, %s3
  %s6 = scalar_select 0, %s5, %s3
  %8 = dma.hbm_to_smem %s0, 16, [#allocation3], [#allocation2]
  %9 = dma.done [#allocation2], 16
  %10 = sfence
  $region1: #{tpu_custom_call.1} parent=0
    #allocation4 [shape = 'u8[8192]{0}', space=vmem, size = 0x2000, scoped, tag = 'input window, operand 1']
    #allocation5 [shape = 's32[2]{0}', space=sflag, size = 0x8, scoped, tag = 'scoped memory for tpu_custom_call.1']
    #allocation6 [shape = 's32[2]{0}', space=sflag, size = 0x8, scoped, tag = 'scoped memory for tpu_custom_call.1']
    #allocation7 [shape = 'u8[8192]{0}', space=vmem, size = 0x2000, scoped, tag = 'output window, operand 0']
    %11 = vsyncpa [#allocation5], 0
    %s12 = scalar_lea.sflag [#allocation5], 1
    %13 = vsyncpa %s12, 0
    %14 = vsyncpa [#allocation6], 0
    %s15 = scalar_lea.sflag [#allocation6], 1
    %16 = vsyncpa %s15, 0
    loop: start=0, step=1, limit=6
    $region2: #{tpu_custom_call.1} parent=1 // loop_pre_header
      _
    $region3: #{tpu_custom_call.1} parent=1 // loop_header
      %s18 = sphi 0, %s22
      %p19 = scmp.ge.s32.totalorder %s18, 6
      %s30 = sphi 0, %s32
      %s33 = sphi 0, %s30
      %s34 = sphi 0, %s33
      %s50 = sphi 0, %s34
      %s56 = sphi 0, %s58
      %s59 = sphi 0, %s56
      %s60 = sphi 0, %s59
      %s76 = sphi 0, %s60
    $region4: #{tpu_custom_call.1} parent=1 // loop_header_branch
      %21 = sbr.rel (%p19) target = $region8
    $region5: #{tpu_custom_call.1} parent=1 // loop_body
      %s23 = ssub.s32 %s18, 1
      %s24 = ssub.s32 %s18, 2
      %s25 = sadd.s32 %s18, 1
      %s26 = sld [smem:[#allocation3 + %s18]]
      %s27 = sld [smem:[#allocation3 + %s25]]
      %s28 = ssub.s32 %s26, %s27
      %p29 = scmp.eq.s32.totalorder %s28, 0
      %s31 = sadd.s32 %s30, 1
      %s32 = scalar_select %p29, %s30, %s31
      %p35 = pneg %p29
      %p36 = scmp.eq.s32.totalorder %s18, 3
      %p37 = por %p35, %p36
      %p38 = scmp.ne.s32.totalorder %s30, %s33
      %p39 = scmp.eq.s32.totalorder %s18, 0
      %p40 = por %p38, %p39
      %p41 = scmp.ne.s32.totalorder %s30, %s33
      %p42 = scmp.eq.s32.totalorder %s23, 3
      %p43 = por %p41, %p42
      %p44 = scmp.ne.s32.totalorder %s33, %s34
      %p45 = scmp.eq.s32.totalorder %s23, 0
      %p46 = por %p44, %p45
      %p47 = scmp.ne.s32.totalorder %s33, %s34
      %p48 = scmp.eq.s32.totalorder %s24, 3
      %p49 = por %p47, %p48
      %p51 = scmp.ne.s32.totalorder %s34, %s50
      %p52 = scmp.eq.s32.totalorder %s24, 0
      %p53 = por %p51, %p52
      %s54 = ssub.s32 %s18, %s25
      %p55 = scmp.eq.s32.totalorder %s54, 0
      %s57 = sadd.s32 %s56, 1
      %s58 = scalar_select %p55, %s56, %s57
      %p61 = pneg %p55
      %p62 = scmp.eq.s32.totalorder %s18, 3
      %p63 = por %p61, %p62
      %p64 = scmp.ne.s32.totalorder %s56, %s59
      %p65 = scmp.eq.s32.totalorder %s18, 0
      %p66 = por %p64, %p65
      %p67 = scmp.ne.s32.totalorder %s56, %s59
      %p68 = scmp.eq.s32.totalorder %s23, 3
      %p69 = por %p67, %p68
      %p70 = scmp.ne.s32.totalorder %s59, %s60
      %p71 = scmp.eq.s32.totalorder %s23, 0
      %p72 = por %p70, %p71
      %p73 = scmp.ne.s32.totalorder %s59, %s60
      %p74 = scmp.eq.s32.totalorder %s24, 3
      %p75 = por %p73, %p74
      %p77 = scmp.ne.s32.totalorder %s60, %s76
      %p78 = scmp.eq.s32.totalorder %s24, 0
      %p79 = por %p77, %p78
      %p80 = scmp.le.s32.totalorder 1, %s18
      %p81 = scmp.lt.s32.totalorder %s18, 5
      %p82 = pnand %p80, %p81
      %p83 = pneg %p82
      // Predicated region
      $region9: #{tpu_custom_call.1} parent=5 // pred_check
        _
      $region10: #{tpu_custom_call.1} parent=5 // pred_check_branch
        %85 = sbr.rel (%p82) target = $region12
      $region11: #{tpu_custom_call.1} parent=5 // pred_region
        %s86 = ssub.s32 %s18, 1
      $region12: #{tpu_custom_call.1} parent=5 // pred_fallthru
        _
      %p87 = scmp.lt.s32.totalorder %s18, 4
      // Predicated region
      $region13: #{tpu_custom_call.1} parent=5 // pred_check
        %p88 = pneg %p87
      $region14: #{tpu_custom_call.1} parent=5 // pred_check_branch
        %90 = sbr.rel (%p88) target = $region16
      $region15: #{tpu_custom_call.1} parent=5 // pred_region
        // Predicated region
        $region17: #{tpu_custom_call.1} parent=15 // pred_check
          %p91 = pneg %p40
        $region18: #{tpu_custom_call.1} parent=15 // pred_check_branch
          %93 = sbr.rel (%p91) target = $region20
        $region19: #{tpu_custom_call.1} parent=15 // pred_region
          %s94 = sand.u32 %s30, 1
          %s95 = scalar_lea.sflag [#allocation5], %s94
          %s96 = sand.u32 %s30, 1
          %s97 = smul.addr %s96, 8
          %s98 = scalar_lea.vmem [#allocation4], %s97
          %s99 = sld [smem:[#allocation3 + %s18]]
          %s101 = ssub.s32 128, 128
          %102 = vsyncadd %s95, %s101
          %s103 = smul.addr %s99, 32
          %s104 = scalar_lea.hbm %s1, %s103
          %s105 = sshll.u32 %s98, 4
          %s106 = int_to_ptr.vmem [resolvable:$true] %s105
          %111 = dma.hbm_to_vmem [thread:$0]  %s104, 128, %s106, %s95, 512, 32, 2
        $region20: #{tpu_custom_call.1} parent=15 // pred_fallthru
          _
      $region16: #{tpu_custom_call.1} parent=5 // pred_fallthru
        _
      %p112 = scmp.le.s32.totalorder 1, %s18
      %p113 = scmp.lt.s32.totalorder %s18, 5
      %p114 = pnand %p112, %p113
      %p115 = pneg %p114
      // Predicated region
      $region21: #{tpu_custom_call.1} parent=5 // pred_check
        _
      $region22: #{tpu_custom_call.1} parent=5 // pred_check_branch
        %117 = sbr.rel (%p114) target = $region24
      $region23: #{tpu_custom_call.1} parent=5 // pred_region
        %s118 = ssub.s32 %s18, 1
        %s119 = sand.u32 %s33, 1
        %s120 = scalar_lea.sflag [#allocation5], %s119
        %s121 = sand.u32 %s33, 1
        %s122 = smul.addr %s121, 8
        %s123 = scalar_lea.vmem [#allocation4], %s122
        // Predicated region
        $region25: #{tpu_custom_call.1} parent=23 // pred_check
          %p124 = pneg %p46
        $region26: #{tpu_custom_call.1} parent=23 // pred_check_branch
          %126 = sbr.rel (%p124) target = $region28
        $region27: #{tpu_custom_call.1} parent=23 // pred_region
          %127 = dma.done %s120, 128
        $region28: #{tpu_custom_call.1} parent=23 // pred_fallthru
          _
        %s128 = sand.u32 %s33, 1
        %s129 = scalar_lea.sflag [#allocation5], %s128
        %s130 = sand.u32 %s33, 1
        %s131 = smul.addr %s130, 8
        %s132 = scalar_lea.vmem [#allocation4], %s131
        %p133 = pneg %p46
        %p134 = pneg %p43
        %p135 = pneg %p72
        %p136 = pneg %p69
        %s137 = sand.u32 %s59, 1
        %s138 = scalar_lea.sflag [#allocation6], %s137
        %s139 = sand.u32 %s59, 1
        %s140 = smul.addr %s139, 8
        %s141 = scalar_lea.vmem [#allocation7], %s140
        %s142 = sld [smem:[#allocation3 + %s23]]
        %v143 = vld [vmem:[%s123] sm:$0x3]
        %v144 = vld [vmem:[%s123 + $0x2] sm:$0x3]
        %v145 = vld [vmem:[%s123 + $0x4] sm:$0x3]
        %v146 = vld [vmem:[%s123 + $0x6] sm:$0x3]
        %147 = vst [vmem:[%s141] sm:$0x3] %v143
        %148 = vst [vmem:[%s141 + $0x2] sm:$0x3] %v144
        %149 = vst [vmem:[%s141 + $0x4] sm:$0x3] %v145
        %150 = vst [vmem:[%s141 + $0x6] sm:$0x3] %v146
        %s151 = sand.u32 %s59, 1
        %s152 = scalar_lea.sflag [#allocation6], %s151
        %s153 = sand.u32 %s59, 1
        %s154 = smul.addr %s153, 8
        %s155 = scalar_lea.vmem [#allocation7], %s154
        // Predicated region
        $region29: #{tpu_custom_call.1} parent=23 // pred_check
          %p156 = pneg %p69
        $region30: #{tpu_custom_call.1} parent=23 // pred_check_branch
          %158 = sbr.rel (%p156) target = $region32
        $region31: #{tpu_custom_call.1} parent=23 // pred_region
          %s160 = ssub.s32 128, 128
          %161 = vsyncadd %s152, %s160
          %s162 = smul.addr %s23, 32
          %s163 = scalar_lea.hbm %s2, %s162
          %s164 = sshll.u32 %s155, 4
          %s165 = int_to_ptr.vmem [resolvable:$true] %s164
          %170 = dma.vmem_to_hbm [thread:$0]  %s165, 128, %s163, %s152, 32, 128, 2
        $region32: #{tpu_custom_call.1} parent=23 // pred_fallthru
          _
      $region24: #{tpu_custom_call.1} parent=5 // pred_fallthru
        _
      %p171 = scmp.le.s32.totalorder 2, %s18
      // Predicated region
      $region33: #{tpu_custom_call.1} parent=5 // pred_check
        %p172 = pneg %p171
      $region34: #{tpu_custom_call.1} parent=5 // pred_check_branch
        %174 = sbr.rel (%p172) target = $region36
      $region35: #{tpu_custom_call.1} parent=5 // pred_region
        %s175 = ssub.s32 %s18, 2
        // Predicated region
        $region37: #{tpu_custom_call.1} parent=35 // pred_check
          %p176 = pneg %p75
        $region38: #{tpu_custom_call.1} parent=35 // pred_check_branch
          %178 = sbr.rel (%p176) target = $region40
        $region39: #{tpu_custom_call.1} parent=35 // pred_region
          %s179 = sand.u32 %s60, 1
          %s180 = scalar_lea.sflag [#allocation6], %s179
          %s181 = sand.u32 %s60, 1
          %s182 = smul.addr %s181, 8
          %s183 = scalar_lea.vmem [#allocation7], %s182
          %184 = dma.done %s180, 128
        $region40: #{tpu_custom_call.1} parent=35 // pred_fallthru
          _
      $region36: #{tpu_custom_call.1} parent=5 // pred_fallthru
        _
    $region6: #{tpu_custom_call.1} parent=1 // loop_footer
      %s22 = sadd.s32 1, %s18
    $region7: #{tpu_custom_call.1} parent=1 // loop_footer_branch
      %17 = sbr.rel target = $region3
    $region8: #{tpu_custom_call.1} parent=1 // loop_exit
      _
    %185 = vsyncpa [#allocation5], 1
    %s186 = scalar_lea.sflag [#allocation5], 1
    %187 = vsyncpa %s186, 1
    %188 = vsyncpa [#allocation6], 1
    %s189 = scalar_lea.sflag [#allocation6], 1
    %190 = vsyncpa %s189, 1

</llo_original>
